<compile_context>
chip_gen: v7x
topology: tpu7x:2x2x1
jax: 0.10.0
libtpu: 0.0.40
codegen_flags: <defaults>
</compile_context>

<pallas_src>
import functools

import jax
import jax.numpy as jnp
from jax import lax
from jax.experimental import pallas as pl
from jax.experimental.pallas import tpu as pltpu

_MASK_FILL = -1e30  # effectively -inf for an f32 softmax (exp underflows to 0)


def _round_up(x, m):
    return ((x + m - 1) // m) * m


def _vmem_plan():
    """Generation-aware (tile budget, vmem_limit_bytes)."""
    cap = 64 * 1024 * 1024  # conservative fallback = v7x per-core VMEM
    try:
        cap = int(pltpu.get_tpu_info().vmem_capacity_bytes)
    except Exception:
        pass
    limit = min(int(cap * 0.8), cap - 8 * 1024 * 1024)   # scoped limit we request
    budget = int(limit * 0.75)                           # tile-picker target
    return budget, limit


def _choose_tiles(B, S_p, sdim_p, tdim_p, csize, c_osize, a_osize,
                  masked, with_align, budget, tt_cands):
    """Pick (batch_block BB, tgt_block TT); every candidate is sublane-legal."""

    def footprint(bb, tt):
        f = 2 * bb * tt * tdim_p * csize          # source block (double buffered)
        f += 2 * bb * S_p * sdim_p * csize        # memory_bank block (double buffered)
        f += sdim_p * tdim_p * csize              # weight block (Buffered(1))
        if masked:
            f += 2 * bb * S_p * 4                 # additive f32 bias block
        f += 2 * bb * tt * sdim_p * c_osize       # c output block
        if with_align:
            f += 2 * bb * tt * S_p * a_osize      # align output block
        # coexisting in-kernel temporaries: h_t_proj (f32 + compute cast),
        # scores / exp / probs (f32) and the compute-dtype cast of the probs.
        f += bb * tt * sdim_p * (4 + csize)
        f += bb * tt * S_p * (3 * 4 + csize)
        return f

    for tt in tt_cands:                           # largest TT first
        cap_rows = max(1, 1024 // tt)
        cap_mega = max(1, B // 2) if B > 1 else 1  # keep >=2 batch steps for megacore
        max_bb = min(B, cap_rows, cap_mega)
        for bb in range(max_bb, 0, -1):
            if B % bb == 0 and footprint(bb, tt) <= budget:
                return bb, tt
    # TODO(synk): flash-style S tiling when even the minimal tile overflows VMEM.
    return 1, tt_cands[-1]


def _global_attention_kernel(*refs, masked, with_align, compute_dtype):
    src_ref, mem_ref, w_ref = refs[0], refs[1], refs[2]
    n_in = 3
    bias_ref = None
    if masked:
        bias_ref = refs[3]
        n_in = 4
    c_ref = refs[n_in]
    attn_ref = refs[n_in + 1] if with_align else None

    bb, tt, tdim = src_ref.shape
    sdim = mem_ref.shape[-1]

    h_t = src_ref[...].reshape(bb * tt, tdim)     # pre-cast to compute_dtype
    w = w_ref[...]                                # (sdim, tdim), compute_dtype
    h_s = mem_ref[...]                            # (bb, S, sdim), compute_dtype

    # linear_in (no bias): contract tdim against W's dim 1 -> (bb*tt, sdim).
    # Flattening bb*tt rows keeps the MXU M dim large; no explicit W.T copy.
    h_t_proj = lax.dot_general(
        h_t, w, dimension_numbers=(((1,), (1,)), ((), ())),
        preferred_element_type=jnp.float32,
    ).reshape(bb, tt, sdim)

    # 'general' score: contract sdim against sdim, batched over bb -> (bb, tt, S).
    scores = lax.dot_general(
        h_t_proj.astype(compute_dtype), h_s,
        dimension_numbers=(((2,), (2,)), ((0,), (0,))),
        preferred_element_type=jnp.float32,
    )

    if masked:
        scores = scores + bias_ref[...]           # (bb, 1, S) additive -inf bias

    # softmax over src_len (all f32).
    m = jnp.max(scores, axis=-1, keepdims=True)
    p = jnp.exp(scores - m)
    denom = jnp.sum(p, axis=-1, keepdims=True)
    inv = pl.reciprocal(denom, approx=True)       # EUP slot
    inv = inv * (2.0 - denom * inv)               # one Newton step -> ~f32 exact
    align = p * inv

    if with_align:
        attn_ref[...] = align.astype(attn_ref.dtype)

    # context: align @ memory_bank, batched over bb, f32 accumulation.
    c = lax.dot_general(
        align.astype(compute_dtype), h_s,
        dimension_numbers=(((2,), (1,)), ((0,), (0,))),
        preferred_element_type=jnp.float32,
    )
    c_ref[...] = c.astype(c_ref.dtype)


def global_attention_general(memory_bank, source, w_in, memory_mask=None,
                             compute_dtype=None, return_align=True,
                             align_dtype=None):
    """GlobalAttention(attn_type='general') forward.

    memory_bank: (B, S, sdim); source: (B, T, tdim) or (B, tdim);
    w_in = linear_in.weight, shape (sdim, tdim); memory_mask: optional (B, S),
    nonzero/True == valid source position.  Returns (c, align) — align is None
    when return_align=False.
    """
    if source.ndim == 2:                          # matches source.unsqueeze(1)
        source = source[:, None, :]
    B, S, sdim = memory_bank.shape
    Bq, T, tdim = source.shape
    assert Bq == B and w_in.shape == (sdim, tdim)

    out_dtype = memory_bank.dtype
    if align_dtype is None:
        align_dtype = out_dtype
    if compute_dtype is None:
        # Native bf16 MXU operand path (f32 accumulation / f32 softmax).
        compute_dtype = (jnp.bfloat16 if memory_bank.dtype == jnp.float32
                         else memory_bank.dtype)
    compute_dtype = jnp.dtype(compute_dtype)

    # Lane-align contraction / output-minor dims to 128 and target rows to the
    # 8-sublane granule.  Zero padding is exact for the matmuls; padded source
    # positions are masked out of the softmax; outputs are sliced back.
    S_p = _round_up(S, 128)
    sdim_p = _round_up(sdim, 128)
    tdim_p = _round_up(tdim, 128)
    if T <= 512:
        T_p = _round_up(T, 8)
        tt_cands = [T_p]
    else:
        T_p = _round_up(T, 128)
        tt_cands = [c for c in (512, 384, 256, 128) if T_p % c == 0]

    mb = memory_bank.astype(compute_dtype)
    if (S_p, sdim_p) != (S, sdim):
        mb = jnp.pad(mb, ((0, 0), (0, S_p - S), (0, sdim_p - sdim)))
    src = source.astype(compute_dtype)
    if (T_p, tdim_p) != (T, tdim):
        src = jnp.pad(src, ((0, 0), (0, T_p - T), (0, tdim_p - tdim)))
    w = w_in.astype(compute_dtype)
    if (sdim_p, tdim_p) != (sdim, tdim):
        w = jnp.pad(w, ((0, sdim_p - sdim), (0, tdim_p - tdim)))

    masked = (memory_mask is not None) or (S_p != S)

    budget, vmem_limit = _vmem_plan()
    BB, TT = _choose_tiles(
        B, S_p, sdim_p, tdim_p,
        compute_dtype.itemsize, jnp.dtype(out_dtype).itemsize,
        jnp.dtype(align_dtype).itemsize,
        masked, return_align, budget, tt_cands)
    grid = (B // BB, T_p // TT)

    in_specs = [
        pl.BlockSpec((BB, TT, tdim_p), lambda b, t: (b, t, 0)),   # source (tiled)
        pl.BlockSpec((BB, S_p, sdim_p), lambda b, t: (b, 0, 0)),  # memory_bank
        pl.BlockSpec((sdim_p, tdim_p), lambda b, t: (0, 0),       # weight (resident,
                     pipeline_mode=pl.Buffered(1)),               #  single-buffered)
    ]
    inputs = [src, mb, w]

    if masked:
        if memory_mask is not None:
            valid = memory_mask.astype(bool)
        else:
            valid = jnp.ones((B, S), dtype=bool)
        if S_p != S:
            valid = jnp.pad(valid, ((0, 0), (0, S_p - S)), constant_values=False)
        bias = jnp.where(valid, 0.0, _MASK_FILL).astype(jnp.float32)[:, None, :]
        in_specs.append(pl.BlockSpec((BB, 1, S_p), lambda b, t: (b, 0, 0)))
        inputs.append(bias)

    out_shapes = [jax.ShapeDtypeStruct((B, T_p, sdim_p), out_dtype)]
    out_specs = [pl.BlockSpec((BB, TT, sdim_p), lambda b, t: (b, t, 0))]
    if return_align:
        out_shapes.append(jax.ShapeDtypeStruct((B, T_p, S_p), align_dtype))
        out_specs.append(pl.BlockSpec((BB, TT, S_p), lambda b, t: (b, t, 0)))

    kernel = functools.partial(_global_attention_kernel, masked=masked,
                               with_align=return_align,
                               compute_dtype=compute_dtype)
    outs = pl.pallas_call(
        kernel,
        out_shape=tuple(out_shapes),
        grid_spec=pltpu.PrefetchScalarGridSpec(
            num_scalar_prefetch=0,
            grid=grid,
            in_specs=in_specs,
            out_specs=out_specs,
        ),
        compiler_params=pltpu.CompilerParams(
            # Core-parallelism lands on the batch axis (disjoint memory_bank
            # streams on v7x); the inner t axis re-uses the resident block.
            dimension_semantics=("parallel", "arbitrary"),
            vmem_limit_bytes=vmem_limit,
        ),
    )(*inputs)

    if return_align:
        c, align = outs
    else:
        c, align = outs[0], None

    if (T_p, sdim_p) != (T, sdim):
        c = c[:, :T, :sdim]
    if return_align and (T_p, S_p) != (T, S):
        align = align[:, :T, :S]
    return c, align


def _reference(memory_bank, source, w_in, memory_mask=None):
    h_t = jnp.einsum('btd,sd->bts', source, w_in)           # linear_in (tdim->sdim)
    scores = jnp.einsum('bts,bks->btk', h_t, memory_bank)   # (B, T, S)
    if memory_mask is not None:
        scores = jnp.where(memory_mask[:, None, :].astype(bool), scores, -jnp.inf)
    align = jax.nn.softmax(scores, axis=-1)
    c = jnp.einsum('btk,bks->bts', align, memory_bank)
    return c, align


if __name__ == "__main__":
    key = jax.random.PRNGKey(0)
    batch, src_len, tgt_len = 2, 16, 8
    sdim, tdim = 32, 32

    k1, k2, k3 = jax.random.split(key, 3)
    memory_bank = jax.random.normal(k1, (batch, src_len, sdim), dtype=jnp.float32)
    source = jax.random.normal(k2, (batch, tgt_len, tdim), dtype=jnp.float32)
    bound = 1.0 / (tdim ** 0.5)  # nn.Linear default init range
    w_in = jax.random.uniform(k3, (sdim, tdim), minval=-bound, maxval=bound,
                              dtype=jnp.float32)
    c_ref, align_ref = _reference(memory_bank, source, w_in)

    # --- unmasked (padded-S path), f32 operands (strict check) ---
    c, align = global_attention_general(memory_bank, source, w_in,
                                        compute_dtype=jnp.float32)
    c, align = jax.block_until_ready(c), jax.block_until_ready(align)
    assert c.shape == (batch, tgt_len, sdim)
    assert align.shape == (batch, tgt_len, src_len)
    assert jnp.allclose(c, c_ref, atol=1e-4, rtol=1e-4)
    assert jnp.allclose(align, align_ref, atol=1e-5, rtol=1e-4)

    # --- masked, f32 (memory_mask path) ---
    lengths = jnp.array([src_len, src_len - 5], dtype=jnp.int32)
    memory_mask = jnp.arange(src_len)[None, :] < lengths[:, None]
    c_m, align_m = global_attention_general(memory_bank, source, w_in,
                                            memory_mask=memory_mask,
                                            compute_dtype=jnp.float32)
    c_m, align_m = jax.block_until_ready(c_m), jax.block_until_ready(align_m)
    c_mref, align_mref = _reference(memory_bank, source, w_in, memory_mask)
    assert jnp.allclose(c_m, c_mref, atol=1e-4, rtol=1e-4)
    assert jnp.allclose(align_m, align_mref, atol=1e-5, rtol=1e-4)
    # masked positions must receive (numerically) zero attention
    assert jnp.all(jnp.where(memory_mask[:, None, :], 0.0, align_m) < 1e-6)

    # --- c-only path (align write dropped) ---
    c_only, align_none = global_attention_general(memory_bank, source, w_in,
                                                  compute_dtype=jnp.float32,
                                                  return_align=False)
    c_only = jax.block_until_ready(c_only)
    assert align_none is None
    assert jnp.allclose(c_only, c_ref, atol=1e-4, rtol=1e-4)

    # --- already lane-aligned shapes (no padding, unmasked kernel branch) ---
    S2, D2, T2 = 128, 128, 8
    mb2 = jax.random.normal(k1, (batch, S2, D2), dtype=jnp.float32)
    src2 = jax.random.normal(k2, (batch, T2, D2), dtype=jnp.float32)
    b2 = 1.0 / (D2 ** 0.5)
    w2 = jax.random.uniform(k3, (D2, D2), minval=-b2, maxval=b2, dtype=jnp.float32)
    c2, a2 = global_attention_general(mb2, src2, w2, compute_dtype=jnp.float32)
    c2, a2 = jax.block_until_ready(c2), jax.block_until_ready(a2)
    c2_ref, a2_ref = _reference(mb2, src2, w2)
    assert jnp.allclose(c2, c2_ref, atol=1e-3, rtol=1e-3)
    assert jnp.allclose(a2, a2_ref, atol=1e-4, rtol=1e-3)

    # --- default path: bf16 matmul operands + bf16 align (loose smoke test) ---
    c_bf, align_bf = global_attention_general(memory_bank, source, w_in,
                                              align_dtype=jnp.bfloat16)
    c_bf, align_bf = jax.block_until_ready(c_bf), jax.block_until_ready(align_bf)
    assert align_bf.dtype == jnp.bfloat16
    assert bool(jnp.all(jnp.isfinite(c_bf.astype(jnp.float32))))
    assert float(jnp.max(jnp.abs(align_bf.astype(jnp.float32) - align_ref))) < 1e-1
    assert float(jnp.max(jnp.abs(c_bf - c_ref))) < 3.5e-1

    print("KERNEL_OK")
</pallas_src>

<mosaic_0001>
module attributes {stable_mosaic.version = 11 : i64} {
  func.func @_global_attention_kernel(%arg0: i32, %arg1: i32, %arg2: memref<1x8x128xf32, #tpu.memory_space<vmem>>, %arg3: memref<1x128x128xf32, #tpu.memory_space<vmem>>, %arg4: memref<128x128xf32, #tpu.memory_space<vmem>>, %arg5: memref<1x1x128xf32, #tpu.memory_space<vmem>>, %arg6: memref<1x8x128xf32, #tpu.memory_space<vmem>>, %arg7: memref<1x8x128xf32, #tpu.memory_space<vmem>>) attributes {dimension_semantics = [#tpu.dimension_semantics<parallel>, #tpu.dimension_semantics<arbitrary>], iteration_bounds = array<i64: 2, 1>, scalar_prefetch = 0 : i64, scratch_operands = 0 : i64, tpu.core_type = #tpu.core_type<tc>, window_params = [{transform_indices = @transform_0, window_bounds = array<i64: 1, 8, 128>}, {transform_indices = @transform_1, window_bounds = array<i64: 1, 128, 128>}, {pipeline_mode = #tpu.pipeline_mode<synchronous>, transform_indices = @transform_2, window_bounds = array<i64: 128, 128>}, {transform_indices = @transform_3, window_bounds = array<i64: 1, 1, 128>}, {transform_indices = @transform_4, window_bounds = array<i64: 1, 8, 128>}, {transform_indices = @transform_5, window_bounds = array<i64: 1, 8, 128>}]} {
    %c0 = arith.constant 0 : index
    %c0_0 = arith.constant 0 : index
    %c0_1 = arith.constant 0 : index
    %0 = vector.load %arg2[%c0, %c0_0, %c0_1] : memref<1x8x128xf32, #tpu.memory_space<vmem>>, vector<1x8x128xf32>
    %1 = vector.shape_cast %0 : vector<1x8x128xf32> to vector<8x128xf32>
    %c0_2 = arith.constant 0 : index
    %c0_3 = arith.constant 0 : index
    %2 = vector.load %arg4[%c0_2, %c0_3] : memref<128x128xf32, #tpu.memory_space<vmem>>, vector<128x128xf32>
    %c0_4 = arith.constant 0 : index
    %c0_5 = arith.constant 0 : index
    %c0_6 = arith.constant 0 : index
    %3 = vector.load %arg3[%c0_4, %c0_5, %c0_6] : memref<1x128x128xf32, #tpu.memory_space<vmem>>, vector<1x128x128xf32>
    %cst = arith.constant dense<0.000000e+00> : vector<8x128xf32>
    %4 = tpu.matmul %1, %2, %cst {dimension_numbers = #tpu.dot_dimension_numbers<[1], [1], [0], [0], [0, 0, 1, 0], [], []>} : vector<8x128xf32>, vector<128x128xf32>, vector<8x128xf32> -> vector<8x128xf32>
    %5 = vector.shape_cast %4 : vector<8x128xf32> to vector<1x8x128xf32>
    %cst_7 = arith.constant dense<0.000000e+00> : vector<1x8x128xf32>
    %6 = tpu.matmul %5, %3, %cst_7 {dimension_numbers = #tpu.dot_dimension_numbers<[2], [2], [1], [1], [0, 0, 0, 1, 1, 1], [0], [0]>} : vector<1x8x128xf32>, vector<1x128x128xf32>, vector<1x8x128xf32> -> vector<1x8x128xf32>
    %c0_8 = arith.constant 0 : index
    %c0_9 = arith.constant 0 : index
    %c0_10 = arith.constant 0 : index
    %7 = vector.load %arg5[%c0_8, %c0_9, %c0_10] : memref<1x1x128xf32, #tpu.memory_space<vmem>>, vector<1x1x128xf32>
    %8 = vector.broadcast %7 : vector<1x1x128xf32> to vector<1x8x128xf32>
    %9 = arith.addf %6, %8 : vector<1x8x128xf32>
    %cst_11 = arith.constant dense<0xFF800000> : vector<1x8xf32>
    %10 = vector.multi_reduction <maximumf>, %9, %cst_11 [2] : vector<1x8x128xf32> to vector<1x8xf32>
    %11 = vector.shape_cast %10 : vector<1x8xf32> to vector<1x8x1xf32>
    %12 = vector.broadcast %11 : vector<1x8x1xf32> to vector<1x8x128xf32>
    %13 = arith.subf %9, %12 : vector<1x8x128xf32>
    %14 = math.exp %13 : vector<1x8x128xf32>
    %cst_12 = arith.constant dense<0.000000e+00> : vector<1x8xf32>
    %15 = vector.multi_reduction <add>, %14, %cst_12 [2] : vector<1x8x128xf32> to vector<1x8xf32>
    %16 = vector.shape_cast %15 : vector<1x8xf32> to vector<1x8x1xf32>
    %17 = tpu.reciprocal %16 {approx = true} : vector<1x8x1xf32> -> vector<1x8x1xf32>
    %18 = arith.mulf %16, %17 : vector<1x8x1xf32>
    %cst_13 = arith.constant 2.000000e+00 : f32
    %19 = vector.broadcast %cst_13 : f32 to vector<1x8x1xf32>
    %20 = arith.subf %19, %18 : vector<1x8x1xf32>
    %21 = arith.mulf %17, %20 : vector<1x8x1xf32>
    %22 = vector.broadcast %21 : vector<1x8x1xf32> to vector<1x8x128xf32>
    %23 = arith.mulf %14, %22 : vector<1x8x128xf32>
    %c0_14 = arith.constant 0 : index
    %c0_15 = arith.constant 0 : index
    %c0_16 = arith.constant 0 : index
    %24 = vector.load %arg7[%c0_14, %c0_15, %c0_16] : memref<1x8x128xf32, #tpu.memory_space<vmem>>, vector<1x8x128xf32>
    tpu.vector_store %arg7[%c0_14, %c0_15, %c0_16], %23 {strides = array<i32>} : memref<1x8x128xf32, #tpu.memory_space<vmem>>, vector<1x8x128xf32>,
    %cst_17 = arith.constant dense<0.000000e+00> : vector<1x8x128xf32>
    %25 = tpu.matmul %23, %3, %cst_17 {dimension_numbers = #tpu.dot_dimension_numbers<[2], [1], [1], [2], [0, 0, 0, 1, 1, 2], [0], [0]>} : vector<1x8x128xf32>, vector<1x128x128xf32>, vector<1x8x128xf32> -> vector<1x8x128xf32>
    %c0_18 = arith.constant 0 : index
    %c0_19 = arith.constant 0 : index
    %c0_20 = arith.constant 0 : index
    %26 = vector.load %arg6[%c0_18, %c0_19, %c0_20] : memref<1x8x128xf32, #tpu.memory_space<vmem>>, vector<1x8x128xf32>
    tpu.vector_store %arg6[%c0_18, %c0_19, %c0_20], %25 {strides = array<i32>} : memref<1x8x128xf32, #tpu.memory_space<vmem>>, vector<1x8x128xf32>,
    return
  }
  func.func @transform_0(%arg0: i32, %arg1: i32) -> (i32, i32, i32) {
    %c0_i32 = arith.constant 0 : i32
    %c0_i32_0 = arith.constant 0 : i32
    return %arg0, %arg1, %c0_i32 : i32, i32, i32
  }
  func.func @transform_1(%arg0: i32, %arg1: i32) -> (i32, i32, i32) {
    %c0_i32 = arith.constant 0 : i32
    %c0_i32_0 = arith.constant 0 : i32
    %c0_i32_1 = arith.constant 0 : i32
    return %arg0, %c0_i32, %c0_i32_0 : i32, i32, i32
  }
  func.func @transform_2(%arg0: i32, %arg1: i32) -> (i32, i32) {
    %c0_i32 = arith.constant 0 : i32
    %c0_i32_0 = arith.constant 0 : i32
    %c0_i32_1 = arith.constant 0 : i32
    return %c0_i32, %c0_i32_0 : i32, i32
  }
  func.func @transform_3(%arg0: i32, %arg1: i32) -> (i32, i32, i32) {
    %c0_i32 = arith.constant 0 : i32
    %c0_i32_0 = arith.constant 0 : i32
    %c0_i32_1 = arith.constant 0 : i32
    return %arg0, %c0_i32, %c0_i32_0 : i32, i32, i32
  }
  func.func @transform_4(%arg0: i32, %arg1: i32) -> (i32, i32, i32) {
    %c0_i32 = arith.constant 0 : i32
    %c0_i32_0 = arith.constant 0 : i32
    return %arg0, %arg1, %c0_i32 : i32, i32, i32
  }
  func.func @transform_5(%arg0: i32, %arg1: i32) -> (i32, i32, i32) {
    %c0_i32 = arith.constant 0 : i32
    %c0_i32_0 = arith.constant 0 : i32
    return %arg0, %arg1, %c0_i32 : i32, i32, i32
  }
}

</mosaic_0001>

<llo_original>
// kernel: tpu_custom_call.1
$region0: #{tpu_custom_call.1}
  #allocation0 [shape = 'u32[]', space=smem, size = 0x4, offset = 0x4, fixed_abs, tag = 'smem constant byte address 0x4 - core index']
  #allocation1 [shape = 'u32[144,128]{1,0:T(1,128)}', space=vmem, size = 0x12000, scoped, tag = 'internal scratch']
  %s0 = inlined_call_operand.hbm [shape: f32[2,8,128], index: 0, kind: input, shape index: {}]
  %s1 = inlined_call_operand.hbm [shape: f32[2,128,128], index: 1, kind: input, shape index: {}]
  %s2 = inlined_call_operand.hbm [shape: f32[128,128], index: 2, kind: input, shape index: {}]
  %s3 = inlined_call_operand.vmem [shape: f32[2,1,128], index: 3, kind: input, shape index: {}]
  %s4 = inlined_call_operand.hbm [shape: f32[2,8,128], index: 4, kind: output, shape index: {0}]
  %s5 = inlined_call_operand.hbm [shape: f32[2,8,128], index: 5, kind: output, shape index: {1}]
  %6 = xla_tuple %s4, %s5
  %s7 = sld [smem:[#allocation0]]
  $region69: #{tpu_custom_call.1} parent=0
    _
  %s9 = ssub.s32 1, %s7
  %s10 = scalar_select 0, %s9, %s7
  $region1: #{tpu_custom_call.1} parent=0
    #allocation2 [shape = 'u8[8192]{0}', space=vmem, size = 0x2000, scoped, tag = 'input window, operand 0']
    #allocation3 [shape = 's32[2]{0}', space=sflag, size = 0x8, scoped, tag = 'scoped memory for tpu_custom_call.1']
    #allocation4 [shape = 's32[2]{0}', space=sflag, size = 0x8, scoped, tag = 'scoped memory for tpu_custom_call.1']
    #allocation5 [shape = 'u8[131072]{0}', space=vmem, size = 0x20000, scoped, tag = 'input window, operand 1']
    #allocation6 [shape = 's32[2]{0}', space=sflag, size = 0x8, scoped, tag = 'scoped memory for tpu_custom_call.1']
    #allocation7 [shape = 'u8[65536]{0}', space=vmem, size = 0x10000, scoped, tag = 'input window, operand 2, single buffered']
    #allocation8 [shape = 'u8[8192]{0}', space=vmem, size = 0x2000, scoped, tag = 'output window, operand 0']
    #allocation9 [shape = 'u8[8192]{0}', space=vmem, size = 0x2000, scoped, tag = 'output window, operand 1']
    #allocation10 [shape = 's32[2]{0}', space=sflag, size = 0x8, scoped, tag = 'scoped memory for tpu_custom_call.1']
    %11 = vsyncpa [#allocation3], 0
    %s12 = scalar_lea.sflag [#allocation3], 1
    %13 = vsyncpa %s12, 0
    %14 = vsyncpa [#allocation6], 0
    %s15 = scalar_lea.sflag [#allocation6], 1
    %16 = vsyncpa %s15, 0
    %17 = vsyncpa [#allocation4], 0
    %s18 = scalar_lea.sflag [#allocation4], 1
    %19 = vsyncpa %s18, 0
    %20 = vsyncpa [#allocation10], 0
    %s21 = scalar_lea.sflag [#allocation10], 1
    %22 = vsyncpa %s21, 0
    loop: start=0, step=1, limit=4
    $region2: #{tpu_custom_call.1} parent=1 // loop_pre_header
      _
    $region3: #{tpu_custom_call.1} parent=1 // loop_header
      %s24 = sphi 0, %s28
      %p25 = scmp.ge.s32.totalorder %s24, 4
      %s31 = sphi 0, %s43
      %s32 = sphi 0, %s39
      %s33 = sphi 0, %s31
      %s34 = sphi 0, %s32
      %s35 = sphi 0, %s33
      %s36 = sphi 0, %s34
      %s48 = sphi 0, %s50
      %s51 = sphi 0, %s48
      %s52 = sphi 0, %s51
      %s68 = sphi 0, %s52
      %s74 = sphi 0, %s76
      %s77 = sphi 0, %s74
      %s78 = sphi 0, %s77
      %s94 = sphi 0, %s78
      %s98 = sphi 0, %s98
      %s100 = sphi 0, %s98
      %s101 = sphi 0, %s100
      %s115 = sphi 0, %s101
      %s121 = sphi 0, %s123
      %s124 = sphi 0, %s121
      %s125 = sphi 0, %s124
      %s141 = sphi 0, %s125
      %s149 = sphi 0, %s151
      %s152 = sphi 0, %s149
      %s153 = sphi 0, %s152
      %s169 = sphi 0, %s153
      %s177 = sphi 0, %s179
      %s180 = sphi 0, %s177
      %s181 = sphi 0, %s180
      %s197 = sphi 0, %s181
    $region4: #{tpu_custom_call.1} parent=1 // loop_header_branch
      %27 = sbr.rel (%p25) target = $region8
    $region5: #{tpu_custom_call.1} parent=1 // loop_body
      %s29 = ssub.s32 %s24, 1
      %s30 = ssub.s32 %s24, 2
      %s37 = sadd.s32 1, %s32
      %p38 = scmp.ge.s32.totalorder %s37, 1
      %s39 = scalar_select %p38, 0, %s37
      %s40 = sadd.s32 1, %s31
      %s41 = scalar_select %p38, %s40, %s31
      %p42 = scmp.ge.s32.totalorder %s41, 2
      %s43 = scalar_select %p42, 0, %s41
      %s44 = ssub.s32 %s31, %s43
      %s45 = ssub.s32 %s32, %s39
      %s46 = sor.u32 %s44, %s45
      %p47 = scmp.eq.s32.totalorder %s46, 0
      %s49 = sadd.s32 %s48, 1
      %s50 = scalar_select %p47, %s48, %s49
      %p53 = pneg %p47
      %p54 = scmp.eq.s32.totalorder %s24, 1
      %p55 = por %p53, %p54
      %p56 = scmp.ne.s32.totalorder %s48, %s51
      %p57 = scmp.eq.s32.totalorder %s24, 0
      %p58 = por %p56, %p57
      %p59 = scmp.ne.s32.totalorder %s48, %s51
      %p60 = scmp.eq.s32.totalorder %s29, 1
      %p61 = por %p59, %p60
      %p62 = scmp.ne.s32.totalorder %s51, %s52
      %p63 = scmp.eq.s32.totalorder %s29, 0
      %p64 = por %p62, %p63
      %p65 = scmp.ne.s32.totalorder %s51, %s52
      %p66 = scmp.eq.s32.totalorder %s30, 1
      %p67 = por %p65, %p66
      %p69 = scmp.ne.s32.totalorder %s52, %s68
      %p70 = scmp.eq.s32.totalorder %s30, 0
      %p71 = por %p69, %p70
      %s72 = ssub.s32 %s31, %s43
      %p73 = scmp.eq.s32.totalorder %s72, 0
      %s75 = sadd.s32 %s74, 1
      %s76 = scalar_select %p73, %s74, %s75
      %p79 = pneg %p73
      %p80 = scmp.eq.s32.totalorder %s24, 1
      %p81 = por %p79, %p80
      %p82 = scmp.ne.s32.totalorder %s74, %s77
      %p83 = scmp.eq.s32.totalorder %s24, 0
      %p84 = por %p82, %p83
      %p85 = scmp.ne.s32.totalorder %s74, %s77
      %p86 = scmp.eq.s32.totalorder %s29, 1
      %p87 = por %p85, %p86
      %p88 = scmp.ne.s32.totalorder %s77, %s78
      %p89 = scmp.eq.s32.totalorder %s29, 0
      %p90 = por %p88, %p89
      %p91 = scmp.ne.s32.totalorder %s77, %s78
      %p92 = scmp.eq.s32.totalorder %s30, 1
      %p93 = por %p91, %p92
      %p95 = scmp.ne.s32.totalorder %s78, %s94
      %p96 = scmp.eq.s32.totalorder %s30, 0
      %p97 = por %p95, %p96
      %s99 = sadd.s32 %s98, 1
      %p102 = scmp.eq.s32.totalorder %s24, 1
      %p103 = scmp.ne.s32.totalorder %s98, %s100
      %p104 = scmp.eq.s32.totalorder %s24, 0
      %p105 = por %p103, %p104
      %p106 = scmp.ne.s32.totalorder %s98, %s100
      %p107 = scmp.eq.s32.totalorder %s29, 1
      %p108 = por %p106, %p107
      %p109 = scmp.ne.s32.totalorder %s100, %s101
      %p110 = scmp.eq.s32.totalorder %s29, 0
      %p111 = por %p109, %p110
      %p112 = scmp.ne.s32.totalorder %s100, %s101
      %p113 = scmp.eq.s32.totalorder %s30, 1
      %p114 = por %p112, %p113
      %p116 = scmp.ne.s32.totalorder %s101, %s115
      %p117 = scmp.eq.s32.totalorder %s30, 0
      %p118 = por %p116, %p117
      %s119 = ssub.s32 %s31, %s43
      %p120 = scmp.eq.s32.totalorder %s119, 0
      %s122 = sadd.s32 %s121, 1
      %s123 = scalar_select %p120, %s121, %s122
      %p126 = pneg %p120
      %p127 = scmp.eq.s32.totalorder %s24, 1
      %p128 = por %p126, %p127
      %p129 = scmp.ne.s32.totalorder %s121, %s124
      %p130 = scmp.eq.s32.totalorder %s24, 0
      %p131 = por %p129, %p130
      %p132 = scmp.ne.s32.totalorder %s121, %s124
      %p133 = scmp.eq.s32.totalorder %s29, 1
      %p134 = por %p132, %p133
      %p135 = scmp.ne.s32.totalorder %s124, %s125
      %p136 = scmp.eq.s32.totalorder %s29, 0
      %p137 = por %p135, %p136
      %p138 = scmp.ne.s32.totalorder %s124, %s125
      %p139 = scmp.eq.s32.totalorder %s30, 1
      %p140 = por %p138, %p139
      %p142 = scmp.ne.s32.totalorder %s125, %s141
      %p143 = scmp.eq.s32.totalorder %s30, 0
      %p144 = por %p142, %p143
      %s145 = ssub.s32 %s31, %s43
      %s146 = ssub.s32 %s32, %s39
      %s147 = sor.u32 %s145, %s146
      %p148 = scmp.eq.s32.totalorder %s147, 0
      %s150 = sadd.s32 %s149, 1
      %s151 = scalar_select %p148, %s149, %s150
      %p154 = pneg %p148
      %p155 = scmp.eq.s32.totalorder %s24, 1
      %p156 = por %p154, %p155
      %p157 = scmp.ne.s32.totalorder %s149, %s152
      %p158 = scmp.eq.s32.totalorder %s24, 0
      %p159 = por %p157, %p158
      %p160 = scmp.ne.s32.totalorder %s149, %s152
      %p161 = scmp.eq.s32.totalorder %s29, 1
      %p162 = por %p160, %p161
      %p163 = scmp.ne.s32.totalorder %s152, %s153
      %p164 = scmp.eq.s32.totalorder %s29, 0
      %p165 = por %p163, %p164
      %p166 = scmp.ne.s32.totalorder %s152, %s153
      %p167 = scmp.eq.s32.totalorder %s30, 1
      %p168 = por %p166, %p167
      %p170 = scmp.ne.s32.totalorder %s153, %s169
      %p171 = scmp.eq.s32.totalorder %s30, 0
      %p172 = por %p170, %p171
      %s173 = ssub.s32 %s31, %s43
      %s174 = ssub.s32 %s32, %s39
      %s175 = sor.u32 %s173, %s174
      %p176 = scmp.eq.s32.totalorder %s175, 0
      %s178 = sadd.s32 %s177, 1
      %s179 = scalar_select %p176, %s177, %s178
      %p182 = pneg %p176
      %p183 = scmp.eq.s32.totalorder %s24, 1
      %p184 = por %p182, %p183
      %p185 = scmp.ne.s32.totalorder %s177, %s180
      %p186 = scmp.eq.s32.totalorder %s24, 0
      %p187 = por %p185, %p186
      %p188 = scmp.ne.s32.totalorder %s177, %s180
      %p189 = scmp.eq.s32.totalorder %s29, 1
      %p190 = por %p188, %p189
      %p191 = scmp.ne.s32.totalorder %s180, %s181
      %p192 = scmp.eq.s32.totalorder %s29, 0
      %p193 = por %p191, %p192
      %p194 = scmp.ne.s32.totalorder %s180, %s181
      %p195 = scmp.eq.s32.totalorder %s30, 1
      %p196 = por %p194, %p195
      %p198 = scmp.ne.s32.totalorder %s181, %s197
      %p199 = scmp.eq.s32.totalorder %s30, 0
      %p200 = por %p198, %p199
      %p201 = scmp.le.s32.totalorder 1, %s24
      %p202 = scmp.lt.s32.totalorder %s24, 3
      %p203 = pnand %p201, %p202
      %p204 = pneg %p203
      // Predicated region
      $region9: #{tpu_custom_call.1} parent=5 // pred_check
        _
      $region10: #{tpu_custom_call.1} parent=5 // pred_check_branch
        %206 = sbr.rel (%p203) target = $region12
      $region11: #{tpu_custom_call.1} parent=5 // pred_region
        %s207 = ssub.s32 %s24, 1
        // Predicated region
        $region13: #{tpu_custom_call.1} parent=11 // pred_check
          %p208 = pneg %p111
        $region14: #{tpu_custom_call.1} parent=11 // pred_check_branch
          %210 = sbr.rel (%p208) target = $region16
        $region15: #{tpu_custom_call.1} parent=11 // pred_region
          %s212 = ssub.s32 2048, 2048
          %213 = vsyncadd [#allocation6], %s212
          %s214 = sshll.u32 [#allocation7], 4
          %s215 = int_to_ptr.vmem [resolvable:$true] %s214
          %220 = dma.hbm_to_vmem [thread:$0]  %s2, 2048, %s215, [#allocation6], 128, 128, 8
        $region16: #{tpu_custom_call.1} parent=11 // pred_fallthru
          _
      $region12: #{tpu_custom_call.1} parent=5 // pred_fallthru
        _
      %p221 = scmp.lt.s32.totalorder %s24, 2
      // Predicated region
      $region17: #{tpu_custom_call.1} parent=5 // pred_check
        %p222 = pneg %p221
      $region18: #{tpu_custom_call.1} parent=5 // pred_check_branch
        %224 = sbr.rel (%p222) target = $region20
      $region19: #{tpu_custom_call.1} parent=5 // pred_region
        // Predicated region
        $region21: #{tpu_custom_call.1} parent=19 // pred_check
          %p225 = pneg %p58
        $region22: #{tpu_custom_call.1} parent=19 // pred_check_branch
          %227 = sbr.rel (%p225) target = $region24
        $region23: #{tpu_custom_call.1} parent=19 // pred_region
          %s228 = sand.u32 %s48, 1
          %s229 = scalar_lea.sflag [#allocation3], %s228
          %s230 = sand.u32 %s48, 1
          %s231 = smul.addr %s230, 8
          %s232 = scalar_lea.vmem [#allocation2], %s231
          %s234 = ssub.s32 128, 128
          %235 = vsyncadd %s229, %s234
          %s236 = sadd.s32 %s32, %s31
          %s237 = smul.addr %s236, 128
          %s238 = scalar_lea.hbm %s0, %s237
          %s240 = sshll.u32 %s232, 4
          %s241 = int_to_ptr.vmem [resolvable:$true] %s240
          %243 = dma.hbm_to_vmem [thread:$0]  %s238, 128, %s241, %s229
        $region24: #{tpu_custom_call.1} parent=19 // pred_fallthru
          _
        // Predicated region
        $region25: #{tpu_custom_call.1} parent=19 // pred_check
          %p244 = pneg %p84
        $region26: #{tpu_custom_call.1} parent=19 // pred_check_branch
          %246 = sbr.rel (%p244) target = $region28
        $region27: #{tpu_custom_call.1} parent=19 // pred_region
          %s247 = sand.u32 %s24, 1
          %s248 = scalar_lea.sflag [#allocation6], %s247
          %s249 = sand.u32 %s74, 1
          %s250 = smul.addr %s249, 128
          %s251 = scalar_lea.vmem [#allocation5], %s250
          %s253 = ssub.s32 2048, 2048
          %254 = vsyncadd %s248, %s253
          %s255 = smul.addr %s31, 16
          %s256 = smul.addr %s255, 128
          %s257 = scalar_lea.hbm %s1, %s256
          %s258 = sshll.u32 %s251, 4
          %s259 = int_to_ptr.vmem [resolvable:$true] %s258
          %264 = dma.hbm_to_vmem [thread:$0]  %s257, 2048, %s259, %s248, 128, 128, 8
        $region28: #{tpu_custom_call.1} parent=19 // pred_fallthru
          _
        // Predicated region
        $region29: #{tpu_custom_call.1} parent=19 // pred_check
          %p265 = pneg %p131
        $region30: #{tpu_custom_call.1} parent=19 // pred_check_branch
          %267 = sbr.rel (%p265) target = $region32
        $region31: #{tpu_custom_call.1} parent=19 // pred_region
          %p268 = scmp.lt.s32.totalorder %s31, 1
          %s269 = scalar_select %p268, %s31, 1
          %s270 = scalar_lea.vmem %s3, %s269
        $region32: #{tpu_custom_call.1} parent=19 // pred_fallthru
          _
      $region20: #{tpu_custom_call.1} parent=5 // pred_fallthru
        _
      %p271 = scmp.le.s32.totalorder 1, %s24
      %p272 = scmp.lt.s32.totalorder %s24, 3
      %p273 = pnand %p271, %p272
      %p274 = pneg %p273
      // Predicated region
      $region33: #{tpu_custom_call.1} parent=5 // pred_check
        _
      $region34: #{tpu_custom_call.1} parent=5 // pred_check_branch
        %276 = sbr.rel (%p273) target = $region36
      $region35: #{tpu_custom_call.1} parent=5 // pred_region
        %s277 = ssub.s32 %s24, 1
        %s278 = sand.u32 %s51, 1
        %s279 = scalar_lea.sflag [#allocation3], %s278
        %s280 = sand.u32 %s51, 1
        %s281 = smul.addr %s280, 8
        %s282 = scalar_lea.vmem [#allocation2], %s281
        // Predicated region
        $region37: #{tpu_custom_call.1} parent=35 // pred_check
          %p283 = pneg %p64
        $region38: #{tpu_custom_call.1} parent=35 // pred_check_branch
          %285 = sbr.rel (%p283) target = $region40
        $region39: #{tpu_custom_call.1} parent=35 // pred_region
          %286 = dma.done %s279, 128
        $region40: #{tpu_custom_call.1} parent=35 // pred_fallthru
          _
        %s287 = sand.u32 %s29, 1
        %s288 = scalar_lea.sflag [#allocation6], %s287
        %s289 = sand.u32 %s77, 1
        %s290 = smul.addr %s289, 128
        %s291 = scalar_lea.vmem [#allocation5], %s290
        // Predicated region
        $region41: #{tpu_custom_call.1} parent=35 // pred_check
          %p292 = pneg %p90
        $region42: #{tpu_custom_call.1} parent=35 // pred_check_branch
          %294 = sbr.rel (%p292) target = $region44
        $region43: #{tpu_custom_call.1} parent=35 // pred_region
          %295 = dma.done %s288, 2048
        $region44: #{tpu_custom_call.1} parent=35 // pred_fallthru
          _
        // Predicated region
        $region45: #{tpu_custom_call.1} parent=35 // pred_check
          %p296 = pneg %p111
        $region46: #{tpu_custom_call.1} parent=35 // pred_check_branch
          %298 = sbr.rel (%p296) target = $region48
        $region47: #{tpu_custom_call.1} parent=35 // pred_region
          %299 = dma.done [#allocation6], 2048
        $region48: #{tpu_custom_call.1} parent=35 // pred_fallthru
          _
        %s300 = sand.u32 %s51, 1
        %s301 = scalar_lea.sflag [#allocation3], %s300
        %s302 = sand.u32 %s51, 1
        %s303 = smul.addr %s302, 8
        %s304 = scalar_lea.vmem [#allocation2], %s303
        %p305 = pneg %p64
        %p306 = pneg %p61
        %s307 = sand.u32 %s29, 1
        %s308 = scalar_lea.sflag [#allocation6], %s307
        %s309 = sand.u32 %s77, 1
        %s310 = smul.addr %s309, 128
        %s311 = scalar_lea.vmem [#allocation5], %s310
        %p312 = pneg %p90
        %p313 = pneg %p87
        %p314 = pneg %p111
        %p315 = pneg %p108
        %p316 = scmp.lt.s32.totalorder %s33, 1
        %s317 = scalar_select %p316, %s33, 1
        %s318 = scalar_lea.vmem %s3, %s317
        %p319 = pneg %p137
        %p320 = pneg %p134
        %p321 = pneg %p165
        %p322 = pneg %p162
        %s323 = sand.u32 %s152, 1
        %s324 = scalar_lea.sflag [#allocation4], %s323
        %s325 = sand.u32 %s152, 1
        %s326 = smul.addr %s325, 8
        %s327 = scalar_lea.vmem [#allocation8], %s326
        %p328 = pneg %p193
        %p329 = pneg %p190
        %s330 = sand.u32 %s180, 1
        %s331 = scalar_lea.sflag [#allocation10], %s330
        %s332 = sand.u32 %s180, 1
        %s333 = smul.addr %s332, 8
        %s334 = scalar_lea.vmem [#allocation9], %s333
        %p335 = scmp.lt.s32.totalorder %s33, 1
        %s336 = scalar_select %p335, %s33, 1
        %s337 = scalar_lea.vmem %s3, %s336
        %v338 = vld [vmem:[%s282] sm:$0xff]
        %v339 = vld [vmem:[#allocation7] sm:$0xff]
        %v340 = vld [vmem:[#allocation7 + $0x8] sm:$0xff]
        %v341 = vld [vmem:[#allocation7 + $0x10] sm:$0xff]
        %v342 = vld [vmem:[#allocation7 + $0x18] sm:$0xff]
        %v343 = vld [vmem:[#allocation7 + $0x20] sm:$0xff]
        %v344 = vld [vmem:[#allocation7 + $0x28] sm:$0xff]
        %v345 = vld [vmem:[#allocation7 + $0x30] sm:$0xff]
        %v346 = vld [vmem:[#allocation7 + $0x38] sm:$0xff]
        %v347 = vld [vmem:[#allocation7 + $0x40] sm:$0xff]
        %v348 = vld [vmem:[#allocation7 + $0x48] sm:$0xff]
        %v349 = vld [vmem:[#allocation7 + $0x50] sm:$0xff]
        %v350 = vld [vmem:[#allocation7 + $0x58] sm:$0xff]
        %v351 = vld [vmem:[#allocation7 + $0x60] sm:$0xff]
        %v352 = vld [vmem:[#allocation7 + $0x68] sm:$0xff]
        %v353 = vld [vmem:[#allocation7 + $0x70] sm:$0xff]
        %v354 = vld [vmem:[#allocation7 + $0x78] sm:$0xff]
        %v355 = vld [vmem:[%s291] sm:$0xff]
        %v356 = vld [vmem:[%s291 + $0x8] sm:$0xff]
        %v357 = vld [vmem:[%s291 + $0x10] sm:$0xff]
        %v358 = vld [vmem:[%s291 + $0x18] sm:$0xff]
        %v359 = vld [vmem:[%s291 + $0x20] sm:$0xff]
        %v360 = vld [vmem:[%s291 + $0x28] sm:$0xff]
        %v361 = vld [vmem:[%s291 + $0x30] sm:$0xff]
        %v362 = vld [vmem:[%s291 + $0x38] sm:$0xff]
        %v363 = vld [vmem:[%s291 + $0x40] sm:$0xff]
        %v364 = vld [vmem:[%s291 + $0x48] sm:$0xff]
        %v365 = vld [vmem:[%s291 + $0x50] sm:$0xff]
        %v366 = vld [vmem:[%s291 + $0x58] sm:$0xff]
        %v367 = vld [vmem:[%s291 + $0x60] sm:$0xff]
        %v368 = vld [vmem:[%s291 + $0x68] sm:$0xff]
        %v369 = vld [vmem:[%s291 + $0x70] sm:$0xff]
        %v370 = vld [vmem:[%s291 + $0x78] sm:$0xff]
        %371 = vmatprep.subr.mxu0 0.0
        %372 = vmatpush1.xpose.msra.mxu0 %v339
        %373 = vmatprep.subr.mxu0 0.0
        %374 = vmatpush1.xpose.msra.mxu0 %v340
        %375 = vmatprep.subr.mxu0 0.0
        %376 = vmatpush1.xpose.msra.mxu0 %v341
        %377 = vmatprep.subr.mxu0 0.0
        %378 = vmatpush1.xpose.msra.mxu0 %v342
        %379 = vmatprep.subr.mxu0 0.0
        %380 = vmatpush1.xpose.msra.mxu0 %v343
        %381 = vmatprep.subr.mxu0 0.0
        %382 = vmatpush1.xpose.msra.mxu0 %v344
        %383 = vmatprep.subr.mxu0 0.0
        %384 = vmatpush1.xpose.msra.mxu0 %v345
        %385 = vmatprep.subr.mxu0 0.0
        %386 = vmatpush1.xpose.msra.mxu0 %v346
        %387 = vmatprep.subr.mxu0 0.0
        %388 = vmatpush1.xpose.msra.mxu0 %v347
        %389 = vmatprep.subr.mxu0 0.0
        %390 = vmatpush1.xpose.msra.mxu0 %v348
        %391 = vmatprep.subr.mxu0 0.0
        %392 = vmatpush1.xpose.msra.mxu0 %v349
        %393 = vmatprep.subr.mxu0 0.0
        %394 = vmatpush1.xpose.msra.mxu0 %v350
        %395 = vmatprep.subr.mxu0 0.0
        %396 = vmatpush1.xpose.msra.mxu0 %v351
        %397 = vmatprep.subr.mxu0 0.0
        %398 = vmatpush1.xpose.msra.mxu0 %v352
        %399 = vmatprep.subr.mxu0 0.0
        %400 = vmatpush1.xpose.msra.mxu0 %v353
        %401 = vmatprep.subr.mxu0 0.0
        %402 = vmatpush1.xpose.msra.mxu0 %v354
        %403 = vmatprep.subr.mxu0 0.0
        %404 = vmatpush1.xpose.msra.mxu0 0.0
        %405 = vmatprep.subr.mxu0 0.0
        %406 = vmatpush1.xpose.msra.mxu0 0.0
        %407 = vmatprep.subr.mxu0 0.0
        %408 = vmatpush1.xpose.msra.mxu0 0.0
        %409 = vmatprep.subr.mxu0 0.0
        %410 = vmatpush1.xpose.msra.mxu0 0.0
        %411 = vmatprep.subr.mxu0 0.0
        %412 = vmatpush1.xpose.msra.mxu0 0.0
        %413 = vmatprep.subr.mxu0 0.0
        %414 = vmatpush1.xpose.msra.mxu0 0.0
        %415 = vmatprep.subr.mxu0 0.0
        %416 = vmatpush1.xpose.msra.mxu0 0.0
        %417 = vmatprep.subr.mxu0 0.0
        %418 = vmatpush1.xpose.msra.mxu0 0.0
        %419 = vmatprep.subr.mxu0 0.0
        %420 = vmatpush1.xpose.msra.mxu0 0.0
        %421 = vmatprep.subr.mxu0 0.0
        %422 = vmatpush1.xpose.msra.mxu0 0.0
        %423 = vmatprep.subr.mxu0 0.0
        %424 = vmatpush1.xpose.msra.mxu0 0.0
        %425 = vmatprep.subr.mxu0 0.0
        %426 = vmatpush1.xpose.msra.mxu0 0.0
        %427 = vmatprep.subr.mxu0 0.0
        %428 = vmatpush1.xpose.msra.mxu0 0.0
        %429 = vmatprep.subr.mxu0 0.0
        %430 = vmatpush1.xpose.msra.mxu0 0.0
        %431 = vmatprep.subr.mxu0 0.0
        %432 = vmatpush1.xpose.msra.mxu0 0.0
        %433 = vmatprep.subr.mxu0 0.0
        %434 = vmatpush1.xpose.msra.mxu0 0.0
        %435 = vmatprep.mubr.f32.mxu0 0.0
        %436 = vmatmul.mubr.f32.gmra.mrb[0].mxu0 %v338
        %v437 = vpop.f32.mrb[0].mxu0
        %v438 = vadd.f32 0.0, %v437
        %v439 = vpop.f32.mrb[0].mxu0
        %440 = vdwg.mxu0
        %v441 = vld [vmem:[%s337] sm:$0x1]
        %v443 = vlaneseq
        %v444 = vshrl.u32 %v443, 7
        %v445 = vsub.s32 0, %v444
        %v446 = vrot.slane %v441, %v445
        %448 = vmatprep.subr.mxu0 0.0
        %449 = vmatpush1.xpose.msra.mxu0 %v355
        %450 = vmatprep.subr.mxu0 0.0
        %451 = vmatpush1.xpose.msra.mxu0 %v356
        %452 = vmatprep.subr.mxu0 0.0
        %453 = vmatpush1.xpose.msra.mxu0 %v357
        %454 = vmatprep.subr.mxu0 0.0
        %455 = vmatpush1.xpose.msra.mxu0 %v358
        %456 = vmatprep.subr.mxu0 0.0
        %457 = vmatpush1.xpose.msra.mxu0 %v359
        %458 = vmatprep.subr.mxu0 0.0
        %459 = vmatpush1.xpose.msra.mxu0 %v360
        %460 = vmatprep.subr.mxu0 0.0
        %461 = vmatpush1.xpose.msra.mxu0 %v361
        %462 = vmatprep.subr.mxu0 0.0
        %463 = vmatpush1.xpose.msra.mxu0 %v362
        %464 = vmatprep.subr.mxu0 0.0
        %465 = vmatpush1.xpose.msra.mxu0 %v363
        %466 = vmatprep.subr.mxu0 0.0
        %467 = vmatpush1.xpose.msra.mxu0 %v364
        %468 = vmatprep.subr.mxu0 0.0
        %469 = vmatpush1.xpose.msra.mxu0 %v365
        %470 = vmatprep.subr.mxu0 0.0
        %471 = vmatpush1.xpose.msra.mxu0 %v366
        %472 = vmatprep.subr.mxu0 0.0
        %473 = vmatpush1.xpose.msra.mxu0 %v367
        %474 = vmatprep.subr.mxu0 0.0
        %475 = vmatpush1.xpose.msra.mxu0 %v368
        %476 = vmatprep.subr.mxu0 0.0
        %477 = vmatpush1.xpose.msra.mxu0 %v369
        %478 = vmatprep.subr.mxu0 0.0
        %479 = vmatpush1.xpose.msra.mxu0 %v370
        %480 = vmatprep.subr.mxu0 0.0
        %481 = vmatpush1.xpose.msra.mxu0 0.0
        %482 = vmatprep.subr.mxu0 0.0
        %483 = vmatpush1.xpose.msra.mxu0 0.0
        %484 = vmatprep.subr.mxu0 0.0
        %485 = vmatpush1.xpose.msra.mxu0 0.0
        %486 = vmatprep.subr.mxu0 0.0
        %487 = vmatpush1.xpose.msra.mxu0 0.0
        %488 = vmatprep.subr.mxu0 0.0
        %489 = vmatpush1.xpose.msra.mxu0 0.0
        %490 = vmatprep.subr.mxu0 0.0
        %491 = vmatpush1.xpose.msra.mxu0 0.0
        %492 = vmatprep.subr.mxu0 0.0
        %493 = vmatpush1.xpose.msra.mxu0 0.0
        %494 = vmatprep.subr.mxu0 0.0
        %495 = vmatpush1.xpose.msra.mxu0 0.0
        %496 = vmatprep.subr.mxu0 0.0
        %497 = vmatpush1.xpose.msra.mxu0 0.0
        %498 = vmatprep.subr.mxu0 0.0
        %499 = vmatpush1.xpose.msra.mxu0 0.0
        %500 = vmatprep.subr.mxu0 0.0
        %501 = vmatpush1.xpose.msra.mxu0 0.0
        %502 = vmatprep.subr.mxu0 0.0
        %503 = vmatpush1.xpose.msra.mxu0 0.0
        %504 = vmatprep.subr.mxu0 0.0
        %505 = vmatpush1.xpose.msra.mxu0 0.0
        %506 = vmatprep.subr.mxu0 0.0
        %507 = vmatpush1.xpose.msra.mxu0 0.0
        %508 = vmatprep.subr.mxu0 0.0
        %509 = vmatpush1.xpose.msra.mxu0 0.0
        %510 = vmatprep.subr.mxu0 0.0
        %511 = vmatpush1.xpose.msra.mxu0 0.0
        %512 = vmatprep.mubr.f32.mxu0 0.0
        %513 = vmatmul.mubr.f32.gmra.mrb[0].mxu0 %v438
        %v514 = vpop.f32.mrb[0].mxu0
        %v515 = vadd.f32 %v446, %v514
        %v516 = vpop.f32.mrb[0].mxu0
        %517 = vdwg.mxu0
        %518 = vmax.xlane.f32.xlu0 %v515
        %v519 = vpop.xlane.xlu0 %518
        %v520 = vsub.f32 %v515, %v519
        %v521 = vmul.f32 %v520, 1.442695
        %v522 = vpow.pop %v521
        %523 = vadd.xlane.f32.xlu0 %v522
        %v524 = vpop.xlane.xlu0 %523
        %v525 = vrcp.pop %v524
        %v526 = vmul.f32 %v524, %v525
        %v527 = vsub.f32 2.0, %v526
        %v528 = vmul.f32 %v525, %v527
        %v529 = vmul.f32 %v522, %v528
        %530 = vst [vmem:[%s334] sm:$0xff] %v529
        %531 = vmatprep.subr.mxu0 0.0
        %532 = vmatpush1.msra.mxu0 %v355
        %533 = vmatprep.subr.mxu0 0.0
        %534 = vmatpush1.msra.mxu0 %v356
        %535 = vmatprep.subr.mxu0 0.0
        %536 = vmatpush1.msra.mxu0 %v357
        %537 = vmatprep.subr.mxu0 0.0
        %538 = vmatpush1.msra.mxu0 %v358
        %539 = vmatprep.subr.mxu0 0.0
        %540 = vmatpush1.msra.mxu0 %v359
        %541 = vmatprep.subr.mxu0 0.0
        %542 = vmatpush1.msra.mxu0 %v360
        %543 = vmatprep.subr.mxu0 0.0
        %544 = vmatpush1.msra.mxu0 %v361
        %545 = vmatprep.subr.mxu0 0.0
        %546 = vmatpush1.msra.mxu0 %v362
        %547 = vmatprep.subr.mxu0 0.0
        %548 = vmatpush1.msra.mxu0 %v363
        %549 = vmatprep.subr.mxu0 0.0
        %550 = vmatpush1.msra.mxu0 %v364
        %551 = vmatprep.subr.mxu0 0.0
        %552 = vmatpush1.msra.mxu0 %v365
        %553 = vmatprep.subr.mxu0 0.0
        %554 = vmatpush1.msra.mxu0 %v366
        %555 = vmatprep.subr.mxu0 0.0
        %556 = vmatpush1.msra.mxu0 %v367
        %557 = vmatprep.subr.mxu0 0.0
        %558 = vmatpush1.msra.mxu0 %v368
        %559 = vmatprep.subr.mxu0 0.0
        %560 = vmatpush1.msra.mxu0 %v369
        %561 = vmatprep.subr.mxu0 0.0
        %562 = vmatpush1.msra.mxu0 %v370
        %563 = vmatprep.subr.mxu0 0.0
        %564 = vmatpush1.msra.mxu0 0.0
        %565 = vmatprep.subr.mxu0 0.0
        %566 = vmatpush1.msra.mxu0 0.0
        %567 = vmatprep.subr.mxu0 0.0
        %568 = vmatpush1.msra.mxu0 0.0
        %569 = vmatprep.subr.mxu0 0.0
        %570 = vmatpush1.msra.mxu0 0.0
        %571 = vmatprep.subr.mxu0 0.0
        %572 = vmatpush1.msra.mxu0 0.0
        %573 = vmatprep.subr.mxu0 0.0
        %574 = vmatpush1.msra.mxu0 0.0
        %575 = vmatprep.subr.mxu0 0.0
        %576 = vmatpush1.msra.mxu0 0.0
        %577 = vmatprep.subr.mxu0 0.0
        %578 = vmatpush1.msra.mxu0 0.0
        %579 = vmatprep.subr.mxu0 0.0
        %580 = vmatpush1.msra.mxu0 0.0
        %581 = vmatprep.subr.mxu0 0.0
        %582 = vmatpush1.msra.mxu0 0.0
        %583 = vmatprep.subr.mxu0 0.0
        %584 = vmatpush1.msra.mxu0 0.0
        %585 = vmatprep.subr.mxu0 0.0
        %586 = vmatpush1.msra.mxu0 0.0
        %587 = vmatprep.subr.mxu0 0.0
        %588 = vmatpush1.msra.mxu0 0.0
        %589 = vmatprep.subr.mxu0 0.0
        %590 = vmatpush1.msra.mxu0 0.0
        %591 = vmatprep.subr.mxu0 0.0
        %592 = vmatpush1.msra.mxu0 0.0
        %593 = vmatprep.subr.mxu0 0.0
        %594 = vmatpush1.msra.mxu0 0.0
        %595 = vmatprep.mubr.f32.mxu0 0.0
        %596 = vmatmul.mubr.f32.gmra.mrb[0].mxu0 %v529
        %v597 = vpop.f32.mrb[0].mxu0
        %v598 = vadd.f32 0.0, %v597
        %v599 = vpop.f32.mrb[0].mxu0
        %600 = vdwg.mxu0
        %601 = vst [vmem:[%s327] sm:$0xff] %v598
        %s602 = sand.u32 %s152, 1
        %s603 = scalar_lea.sflag [#allocation4], %s602
        %s604 = sand.u32 %s152, 1
        %s605 = smul.addr %s604, 8
        %s606 = scalar_lea.vmem [#allocation8], %s605
        %s607 = sand.u32 %s180, 1
        %s608 = scalar_lea.sflag [#allocation10], %s607
        %s609 = sand.u32 %s180, 1
        %s610 = smul.addr %s609, 8
        %s611 = scalar_lea.vmem [#allocation9], %s610
        // Predicated region
        $region49: #{tpu_custom_call.1} parent=35 // pred_check
          %p612 = pneg %p162
        $region50: #{tpu_custom_call.1} parent=35 // pred_check_branch
          %614 = sbr.rel (%p612) target = $region52
        $region51: #{tpu_custom_call.1} parent=35 // pred_region
          %s616 = ssub.s32 128, 128
          %617 = vsyncadd %s603, %s616
          %s618 = sadd.s32 %s34, %s33
          %s619 = smul.addr %s618, 128
          %s620 = scalar_lea.hbm %s4, %s619
          %s622 = sshll.u32 %s606, 4
          %s623 = int_to_ptr.vmem [resolvable:$true] %s622
          %625 = dma.vmem_to_hbm [thread:$0]  %s623, 128, %s620, %s603
        $region52: #{tpu_custom_call.1} parent=35 // pred_fallthru
          _
        // Predicated region
        $region53: #{tpu_custom_call.1} parent=35 // pred_check
          %p626 = pneg %p190
        $region54: #{tpu_custom_call.1} parent=35 // pred_check_branch
          %628 = sbr.rel (%p626) target = $region56
        $region55: #{tpu_custom_call.1} parent=35 // pred_region
          %s630 = ssub.s32 128, 128
          %631 = vsyncadd %s608, %s630
          %s632 = sadd.s32 %s34, %s33
          %s633 = smul.addr %s632, 128
          %s634 = scalar_lea.hbm %s5, %s633
          %s636 = sshll.u32 %s611, 4
          %s637 = int_to_ptr.vmem [resolvable:$true] %s636
          %639 = dma.vmem_to_hbm [thread:$0]  %s637, 128, %s634, %s608
        $region56: #{tpu_custom_call.1} parent=35 // pred_fallthru
          _
      $region36: #{tpu_custom_call.1} parent=5 // pred_fallthru
        _
      %p640 = scmp.le.s32.totalorder 2, %s24
      // Predicated region
      $region57: #{tpu_custom_call.1} parent=5 // pred_check
        %p641 = pneg %p640
      $region58: #{tpu_custom_call.1} parent=5 // pred_check_branch
        %643 = sbr.rel (%p641) target = $region60
      $region59: #{tpu_custom_call.1} parent=5 // pred_region
        %s644 = ssub.s32 %s24, 2
        // Predicated region
        $region61: #{tpu_custom_call.1} parent=59 // pred_check
          %p645 = pneg %p168
        $region62: #{tpu_custom_call.1} parent=59 // pred_check_branch
          %647 = sbr.rel (%p645) target = $region64
        $region63: #{tpu_custom_call.1} parent=59 // pred_region
          %s648 = sand.u32 %s153, 1
          %s649 = scalar_lea.sflag [#allocation4], %s648
          %s650 = sand.u32 %s153, 1
          %s651 = smul.addr %s650, 8
          %s652 = scalar_lea.vmem [#allocation8], %s651
          %653 = dma.done %s649, 128
        $region64: #{tpu_custom_call.1} parent=59 // pred_fallthru
          _
        // Predicated region
        $region65: #{tpu_custom_call.1} parent=59 // pred_check
          %p654 = pneg %p196
        $region66: #{tpu_custom_call.1} parent=59 // pred_check_branch
          %656 = sbr.rel (%p654) target = $region68
        $region67: #{tpu_custom_call.1} parent=59 // pred_region
          %s657 = sand.u32 %s181, 1
          %s658 = scalar_lea.sflag [#allocation10], %s657
          %s659 = sand.u32 %s181, 1
          %s660 = smul.addr %s659, 8
          %s661 = scalar_lea.vmem [#allocation9], %s660
          %662 = dma.done %s658, 128
        $region68: #{tpu_custom_call.1} parent=59 // pred_fallthru
          _
      $region60: #{tpu_custom_call.1} parent=5 // pred_fallthru
        _
    $region6: #{tpu_custom_call.1} parent=1 // loop_footer
      %s28 = sadd.s32 1, %s24
    $region7: #{tpu_custom_call.1} parent=1 // loop_footer_branch
      %23 = sbr.rel target = $region3
    $region8: #{tpu_custom_call.1} parent=1 // loop_exit
      _
    %663 = vsyncpa [#allocation3], 1
    %s664 = scalar_lea.sflag [#allocation3], 1
    %665 = vsyncpa %s664, 1
    %666 = vsyncpa [#allocation6], 1
    %s667 = scalar_lea.sflag [#allocation6], 1
    %668 = vsyncpa %s667, 1
    %669 = vsyncpa [#allocation4], 1
    %s670 = scalar_lea.sflag [#allocation4], 1
    %671 = vsyncpa %s670, 1
    %672 = vsyncpa [#allocation10], 1
    %s673 = scalar_lea.sflag [#allocation10], 1
    %674 = vsyncpa %s673, 1

</llo_original>
